<compile_context>
chip_gen: v5e
topology: v5e:2x2
jax: 0.10.0
libtpu: 0.0.40
codegen_flags: <defaults>
</compile_context>

<pallas_src>
import jax
import jax.numpy as jnp
from jax import lax
from jax.experimental import pallas as pl
from jax.experimental.pallas import tpu as pltpu

LANE = 128  # TPU lane width; Cout tiles are 128 (or 256 on wide layers).


def _round_up(x, m):
    return (x + m - 1) // m * m


def _matmul_bias_kernel(p_ref, w_ref, b_ref, o_ref, acc_ref):
    # p_ref:   (tm, tk)      bf16 im2col patches block
    # w_ref:   (tk, tcout)   bf16 He-scaled weight block
    # b_ref:   (1, tcout)    f32 bias block
    # o_ref:   (tm, tcout)   output block (lane-dense, unmasked stores)
    # acc_ref: (tm, tcout)   f32 accumulator scratch (resident across k)
    k = pl.program_id(2)

    @pl.when(k == 0)
    def _init():
        # Bias folded into the accumulator init -> epilogue is just a cast.
        acc_ref[...] = jnp.broadcast_to(b_ref[...].astype(jnp.float32),
                                        acc_ref.shape)

    # One deep (tm, tk) @ (tk, tcout) MXU contraction, f32 accumulation.
    acc_ref[...] += jnp.dot(p_ref[...], w_ref[...],
                            preferred_element_type=jnp.float32)

    @pl.when(k == pl.num_programs(2) - 1)
    def _store():
        o_ref[...] = acc_ref[...].astype(o_ref.dtype)


def he_conv2d(x_nchw, weight_oihw, bias_1o11, *, gain=2, stride=1, padding=1,
              compute_dtype=jnp.bfloat16, tm_target=1024, tk_max=1536,
              interpret=False):
    """Forward pass of HeConv2d. x_nchw: (N, Cin, H, W); NCHW in / NCHW out."""
    N, Cin, H, W = x_nchw.shape
    Cout, Cin_w, KH, KW = weight_oihw.shape
    assert Cin_w == Cin

    scale = float((gain / (Cin * KH * KW)) ** 0.5)
    H_out = (H + 2 * padding - KH) // stride + 1
    W_out = (W + 2 * padding - KW) // stride + 1

    # ---------------- layout glue (plain JAX) ----------------
    x_nhwc = jnp.transpose(x_nchw, (0, 2, 3, 1)).astype(compute_dtype)
    x_pad = jnp.pad(x_nhwc, ((0, 0), (padding, padding),
                             (padding, padding), (0, 0)))
    # im2col: patches[n, h, w, kh*KW + kw, c] = x_pad[n, h*s + kh, w*s + kw, c]
    taps = []
    for kh in range(KH):
        for kw in range(KW):
            taps.append(x_pad[:,
                              kh:kh + (H_out - 1) * stride + 1:stride,
                              kw:kw + (W_out - 1) * stride + 1:stride, :])
    patches = jnp.stack(taps, axis=3)                    # (N, Ho, Wo, KH*KW, Cin)
    K = KH * KW * Cin
    M = N * H_out * W_out
    patches = patches.reshape(M, K)

    # He scale folded into the (tiny) weight: (o,c,kh,kw) -> (kh*KW*Cin+kw*Cin+c, o)
    w2 = (jnp.transpose(weight_oihw, (2, 3, 1, 0)).reshape(K, Cout)
          * scale).astype(compute_dtype)
    b2 = bias_1o11.reshape(1, Cout).astype(jnp.float32)

    # ---------------- tiling ----------------
    Cout_p = _round_up(Cout, LANE)
    tcout = 256 if (Cout_p % 256 == 0) else LANE         # 2x256 MXU on v6e/v7x
    n_cblk = Cout_p // tcout

    tm = min(tm_target, _round_up(M, 8))                 # big M tile; mult. of 8
    M_p = _round_up(M, tm)
    n_mblk = M_p // tm

    if K <= tk_max:
        tk, K_p = K, K                                   # single K block
    else:
        tk = tk_max                                      # multiple of 128
        K_p = _round_up(K, tk)
    n_kblk = K_p // tk

    patches = jnp.pad(patches, ((0, M_p - M), (0, K_p - K)))
    w2 = jnp.pad(w2, ((0, K_p - K), (0, Cout_p - Cout)))
    b2 = jnp.pad(b2, ((0, 0), (0, Cout_p - Cout)))

    # ---------------- VMEM budget from actual block footprint ----------------
    bpe = jnp.dtype(compute_dtype).itemsize
    blk_bytes = (2 * tm * max(tk, LANE) * bpe            # patches (double-buffered)
                 + 2 * _round_up(tk, 16) * tcout * bpe   # weights
                 + 2 * 8 * tcout * 4                     # bias
                 + 2 * tm * tcout * 4                    # output
                 + tm * tcout * 4)                       # f32 accumulator scratch
    vmem_limit = int(min(max(2 * blk_bytes, 32 * 1024 * 1024), 48 * 1024 * 1024))

    out_flat = pl.pallas_call(
        _matmul_bias_kernel,
        out_shape=jax.ShapeDtypeStruct((M_p, Cout_p), x_nchw.dtype),
        grid_spec=pltpu.PrefetchScalarGridSpec(
            num_scalar_prefetch=0,
            grid=(n_mblk, n_cblk, n_kblk),               # k innermost: acc resident
            in_specs=[
                pl.BlockSpec((tm, tk), lambda m, c, k: (m, k)),
                pl.BlockSpec((tk, tcout), lambda m, c, k: (k, c)),
                pl.BlockSpec((1, tcout), lambda m, c, k: (0, c)),
            ],
            out_specs=pl.BlockSpec((tm, tcout), lambda m, c, k: (m, c)),
            scratch_shapes=[pltpu.VMEM((tm, tcout), jnp.float32)],
        ),
        compiler_params=pltpu.CompilerParams(
            dimension_semantics=("parallel", "parallel", "arbitrary"),
            vmem_limit_bytes=vmem_limit,
        ),
        interpret=interpret,
    )(patches, w2, b2)

    out = out_flat[:M, :Cout].reshape(N, H_out, W_out, Cout)
    return jnp.transpose(out, (0, 3, 1, 2))              # back to NCHW


if __name__ == "__main__":
    # Deterministic parameters mirroring HeConv2d.__init__ / InitWeights
    # (bias made non-zero so the bias path is actually exercised).
    in_channels, out_channels, k = 4, 8, 3
    N, H, W = 2, 16, 16

    key = jax.random.PRNGKey(0)
    k_x, k_w, k_b = jax.random.split(key, 3)

    x = jax.random.normal(k_x, (N, in_channels, H, W), dtype=jnp.float32)
    weight = jax.random.normal(k_w, (out_channels, in_channels, k, k),
                               dtype=jnp.float32)          # nn.init.normal_
    bias = 0.1 * jax.random.normal(k_b, (1, out_channels, 1, 1),
                                   dtype=jnp.float32)

    y = he_conv2d(x, weight, bias, gain=2, stride=1, padding=1)
    y = jax.block_until_ready(y)
    assert y.shape == (N, out_channels, H, W)

    scale = (2 / (in_channels * k * k)) ** 0.5

    # Strict check: same bf16-quantized operands as the kernel, f32 math.
    x_q = x.astype(jnp.bfloat16).astype(jnp.float32)
    w_q = (weight * scale).astype(jnp.bfloat16).astype(jnp.float32)
    y_ref_q = lax.conv_general_dilated(
        x_q, w_q, window_strides=(1, 1), padding=((1, 1), (1, 1)),
        dimension_numbers=("NCHW", "OIHW", "NCHW")) + bias
    assert jnp.allclose(y, y_ref_q, rtol=1e-3, atol=1e-3), \
        "mismatch vs bf16-consistent reference"

    # Loose sanity check against the exact f32 module semantics
    # (difference is only the bf16 operand quantization).
    y_ref = lax.conv_general_dilated(
        x, weight, window_strides=(1, 1), padding=((1, 1), (1, 1)),
        dimension_numbers=("NCHW", "OIHW", "NCHW")) * scale + bias
    assert jnp.allclose(y, y_ref, rtol=1e-1, atol=1e-1), \
        "mismatch vs f32 reference"

    print("KERNEL_OK")
</pallas_src>

<mosaic_0001>
module attributes {stable_mosaic.version = 11 : i64} {
  func.func @_matmul_bias_kernel(%arg0: i32, %arg1: i32, %arg2: i32, %arg3: memref<512x36xbf16, #tpu.memory_space<vmem>>, %arg4: memref<36x128xbf16, #tpu.memory_space<vmem>>, %arg5: memref<1x128xf32, #tpu.memory_space<vmem>>, %arg6: memref<512x128xf32, #tpu.memory_space<vmem>>, %arg7: memref<512x128xf32, #tpu.memory_space<vmem>>) attributes {dimension_semantics = [#tpu.dimension_semantics<parallel>, #tpu.dimension_semantics<parallel>, #tpu.dimension_semantics<arbitrary>], iteration_bounds = array<i64: 1, 1, 1>, scalar_prefetch = 0 : i64, scratch_operands = 1 : i64, tpu.core_type = #tpu.core_type<tc>, window_params = [{transform_indices = @transform_0, window_bounds = array<i64: 512, 36>}, {transform_indices = @transform_1, window_bounds = array<i64: 36, 128>}, {transform_indices = @transform_2, window_bounds = array<i64: 1, 128>}, {transform_indices = @transform_3, window_bounds = array<i64: 512, 128>}]} {
    %c0_i32 = arith.constant 0 : i32
    %0 = arith.cmpi eq, %arg2, %c0_i32 : i32
    %1 = arith.extui %0 : i1 to i32
    %c0_i32_0 = arith.constant 0 : i32
    %2 = arith.cmpi ne, %1, %c0_i32_0 : i32
    scf.if %2 {
      %c0_10 = arith.constant 0 : index
      %c0_11 = arith.constant 0 : index
      %12 = vector.load %arg5[%c0_10, %c0_11] : memref<1x128xf32, #tpu.memory_space<vmem>>, vector<1x128xf32>
      %13 = vector.shape_cast %12 : vector<1x128xf32> to vector<1x128xf32>
      %14 = vector.broadcast %13 : vector<1x128xf32> to vector<512x128xf32>
      %c0_12 = arith.constant 0 : index
      %c0_13 = arith.constant 0 : index
      %15 = vector.load %arg7[%c0_12, %c0_13] : memref<512x128xf32, #tpu.memory_space<vmem>>, vector<512x128xf32>
      tpu.vector_store %arg7[%c0_12, %c0_13], %14 {strides = array<i32>} : memref<512x128xf32, #tpu.memory_space<vmem>>, vector<512x128xf32>,
    } else {
    }
    %c0 = arith.constant 0 : index
    %c0_1 = arith.constant 0 : index
    %3 = vector.load %arg7[%c0, %c0_1] : memref<512x128xf32, #tpu.memory_space<vmem>>, vector<512x128xf32>
    %c0_2 = arith.constant 0 : index
    %c0_3 = arith.constant 0 : index
    %4 = vector.load %arg3[%c0_2, %c0_3] : memref<512x36xbf16, #tpu.memory_space<vmem>>, vector<512x36xbf16>
    %c0_4 = arith.constant 0 : index
    %c0_5 = arith.constant 0 : index
    %5 = vector.load %arg4[%c0_4, %c0_5] : memref<36x128xbf16, #tpu.memory_space<vmem>>, vector<36x128xbf16>
    %cst = arith.constant dense<0.000000e+00> : vector<512x128xf32>
    %6 = tpu.matmul %4, %5, %cst {dimension_numbers = #tpu.dot_dimension_numbers<[1], [0], [0], [1], [0, 0, 1, 1], [], []>} : vector<512x36xbf16>, vector<36x128xbf16>, vector<512x128xf32> -> vector<512x128xf32>
    %7 = arith.addf %3, %6 : vector<512x128xf32>
    %c0_6 = arith.constant 0 : index
    %c0_7 = arith.constant 0 : index
    %8 = vector.load %arg7[%c0_6, %c0_7] : memref<512x128xf32, #tpu.memory_space<vmem>>, vector<512x128xf32>
    tpu.vector_store %arg7[%c0_6, %c0_7], %7 {strides = array<i32>} : memref<512x128xf32, #tpu.memory_space<vmem>>, vector<512x128xf32>,
    %c0_i32_8 = arith.constant 0 : i32
    %9 = arith.cmpi eq, %arg2, %c0_i32_8 : i32
    %10 = arith.extui %9 : i1 to i32
    %c0_i32_9 = arith.constant 0 : i32
    %11 = arith.cmpi ne, %10, %c0_i32_9 : i32
    scf.if %11 {
      %c0_10 = arith.constant 0 : index
      %c0_11 = arith.constant 0 : index
      %12 = vector.load %arg7[%c0_10, %c0_11] : memref<512x128xf32, #tpu.memory_space<vmem>>, vector<512x128xf32>
      %c0_12 = arith.constant 0 : index
      %c0_13 = arith.constant 0 : index
      %13 = vector.load %arg6[%c0_12, %c0_13] : memref<512x128xf32, #tpu.memory_space<vmem>>, vector<512x128xf32>
      tpu.vector_store %arg6[%c0_12, %c0_13], %12 {strides = array<i32>} : memref<512x128xf32, #tpu.memory_space<vmem>>, vector<512x128xf32>,
    } else {
    }
    return
  }
  func.func @transform_0(%arg0: i32, %arg1: i32, %arg2: i32) -> (i32, i32) {
    %c0_i32 = arith.constant 0 : i32
    return %arg0, %arg2 : i32, i32
  }
  func.func @transform_1(%arg0: i32, %arg1: i32, %arg2: i32) -> (i32, i32) {
    %c0_i32 = arith.constant 0 : i32
    return %arg2, %arg1 : i32, i32
  }
  func.func @transform_2(%arg0: i32, %arg1: i32, %arg2: i32) -> (i32, i32) {
    %c0_i32 = arith.constant 0 : i32
    %c0_i32_0 = arith.constant 0 : i32
    return %c0_i32, %arg1 : i32, i32
  }
  func.func @transform_3(%arg0: i32, %arg1: i32, %arg2: i32) -> (i32, i32) {
    %c0_i32 = arith.constant 0 : i32
    return %arg0, %arg1 : i32, i32
  }
}

</mosaic_0001>

<llo_original>
// kernel: tpu_custom_call.1
$region0: #{tpu_custom_call.1}
  #allocation0 [shape = 'u32[]', space=smem, size = 0x4, offset = 0x4, fixed_abs, tag = 'smem constant byte address 0x4 - core index']
  #allocation1 [shape = 'u32[72,128]{1,0:T(1,128)}', space=vmem, size = 0x9000, scoped, tag = 'internal scratch']
  #allocation2 [shape = 'f32[512,128]{1,0:T(8,128)}', space=vmem, size = 0x40000, scoped, tag = 'scratch operand']
  %s0 = inlined_call_operand.vmem [shape: bf16[512,36], index: 0, kind: input, shape index: {}]
  %s1 = inlined_call_operand.vmem [shape: bf16[36,128], index: 1, kind: input, shape index: {}]
  %s2 = inlined_call_operand.vmem [shape: f32[1,128], index: 2, kind: input, shape index: {}]
  %s3 = inlined_call_operand.hbm [shape: f32[512,128], index: 3, kind: output, shape index: {}]
  %s4 = sld [smem:[#allocation0]]
  $region30: #{tpu_custom_call.1} parent=0
    _
  %s6 = ssub.s32 1, %s4
  %s7 = scalar_select 0, %s6, %s4
  $region1: #{tpu_custom_call.1} parent=0
    #allocation3 [shape = 'u8[262144]{0}', space=vmem, size = 0x40000, scoped, tag = 'output window, operand 0, single buffered']
    #allocation4 [shape = 's32[1]{0}', space=sflag, size = 0x4, scoped, tag = 'scoped memory for tpu_custom_call.1']
    %8 = vsyncpa [#allocation4], 0
    // Predicated region
    $region2: #{tpu_custom_call.1} parent=1 // pred_check
      _
    $region3: #{tpu_custom_call.1} parent=1 // pred_check_branch
      %10 = sbr.rel (0) target = $region5
    $region4: #{tpu_custom_call.1} parent=1 // pred_region
      _
    $region5: #{tpu_custom_call.1} parent=1 // pred_fallthru
      _
    // Predicated region
    $region6: #{tpu_custom_call.1} parent=1 // pred_check
      _
    $region7: #{tpu_custom_call.1} parent=1 // pred_check_branch
      %12 = sbr.rel (0) target = $region9
    $region8: #{tpu_custom_call.1} parent=1 // pred_region
      _
    $region9: #{tpu_custom_call.1} parent=1 // pred_fallthru
      _
    // Predicated region
    $region10: #{tpu_custom_call.1} parent=1 // pred_check
      _
    $region11: #{tpu_custom_call.1} parent=1 // pred_check_branch
      %14 = sbr.rel (0) target = $region13
    $region12: #{tpu_custom_call.1} parent=1 // pred_region
      _
    $region13: #{tpu_custom_call.1} parent=1 // pred_fallthru
      _
    %p16 = scmp.eq.s32.totalorder 0, 0
    // Predicated region
    $region14: #{tpu_custom_call.1} parent=1 // pred_check
      %p17 = pneg %p16
    $region15: #{tpu_custom_call.1} parent=1 // pred_check_branch
      %19 = sbr.rel (%p17) target = $region17
    $region16: #{tpu_custom_call.1} parent=1 // pred_region
      %v20 = vld [vmem:[%s2] sm:$0x1]
      %v22 = vperm.slane %v20, 0
      %24 = vst [vmem:[#allocation2] sm:$0xff] %v22
      %25 = vst [vmem:[#allocation2 + $0x8] sm:$0xff] %v22
      %26 = vst [vmem:[#allocation2 + $0x10] sm:$0xff] %v22
      %27 = vst [vmem:[#allocation2 + $0x18] sm:$0xff] %v22
      %28 = vst [vmem:[#allocation2 + $0x20] sm:$0xff] %v22
      %29 = vst [vmem:[#allocation2 + $0x28] sm:$0xff] %v22
      %30 = vst [vmem:[#allocation2 + $0x30] sm:$0xff] %v22
      %31 = vst [vmem:[#allocation2 + $0x38] sm:$0xff] %v22
      %32 = vst [vmem:[#allocation2 + $0x40] sm:$0xff] %v22
      %33 = vst [vmem:[#allocation2 + $0x48] sm:$0xff] %v22
      %34 = vst [vmem:[#allocation2 + $0x50] sm:$0xff] %v22
      %35 = vst [vmem:[#allocation2 + $0x58] sm:$0xff] %v22
      %36 = vst [vmem:[#allocation2 + $0x60] sm:$0xff] %v22
      %37 = vst [vmem:[#allocation2 + $0x68] sm:$0xff] %v22
      %38 = vst [vmem:[#allocation2 + $0x70] sm:$0xff] %v22
      %39 = vst [vmem:[#allocation2 + $0x78] sm:$0xff] %v22
      %40 = vst [vmem:[#allocation2 + $0x80] sm:$0xff] %v22
      %41 = vst [vmem:[#allocation2 + $0x88] sm:$0xff] %v22
      %42 = vst [vmem:[#allocation2 + $0x90] sm:$0xff] %v22
      %43 = vst [vmem:[#allocation2 + $0x98] sm:$0xff] %v22
      %44 = vst [vmem:[#allocation2 + $0xa0] sm:$0xff] %v22
      %45 = vst [vmem:[#allocation2 + $0xa8] sm:$0xff] %v22
      %46 = vst [vmem:[#allocation2 + $0xb0] sm:$0xff] %v22
      %47 = vst [vmem:[#allocation2 + $0xb8] sm:$0xff] %v22
      %48 = vst [vmem:[#allocation2 + $0xc0] sm:$0xff] %v22
      %49 = vst [vmem:[#allocation2 + $0xc8] sm:$0xff] %v22
      %50 = vst [vmem:[#allocation2 + $0xd0] sm:$0xff] %v22
      %51 = vst [vmem:[#allocation2 + $0xd8] sm:$0xff] %v22
      %52 = vst [vmem:[#allocation2 + $0xe0] sm:$0xff] %v22
      %53 = vst [vmem:[#allocation2 + $0xe8] sm:$0xff] %v22
      %54 = vst [vmem:[#allocation2 + $0xf0] sm:$0xff] %v22
      %55 = vst [vmem:[#allocation2 + $0xf8] sm:$0xff] %v22
      %56 = vst [vmem:[#allocation2 + $0x100] sm:$0xff] %v22
      %57 = vst [vmem:[#allocation2 + $0x108] sm:$0xff] %v22
      %58 = vst [vmem:[#allocation2 + $0x110] sm:$0xff] %v22
      %59 = vst [vmem:[#allocation2 + $0x118] sm:$0xff] %v22
      %60 = vst [vmem:[#allocation2 + $0x120] sm:$0xff] %v22
      %61 = vst [vmem:[#allocation2 + $0x128] sm:$0xff] %v22
      %62 = vst [vmem:[#allocation2 + $0x130] sm:$0xff] %v22
      %63 = vst [vmem:[#allocation2 + $0x138] sm:$0xff] %v22
      %64 = vst [vmem:[#allocation2 + $0x140] sm:$0xff] %v22
      %65 = vst [vmem:[#allocation2 + $0x148] sm:$0xff] %v22
      %66 = vst [vmem:[#allocation2 + $0x150] sm:$0xff] %v22
      %67 = vst [vmem:[#allocation2 + $0x158] sm:$0xff] %v22
      %68 = vst [vmem:[#allocation2 + $0x160] sm:$0xff] %v22
      %69 = vst [vmem:[#allocation2 + $0x168] sm:$0xff] %v22
      %70 = vst [vmem:[#allocation2 + $0x170] sm:$0xff] %v22
      %71 = vst [vmem:[#allocation2 + $0x178] sm:$0xff] %v22
      %72 = vst [vmem:[#allocation2 + $0x180] sm:$0xff] %v22
      %73 = vst [vmem:[#allocation2 + $0x188] sm:$0xff] %v22
      %74 = vst [vmem:[#allocation2 + $0x190] sm:$0xff] %v22
      %75 = vst [vmem:[#allocation2 + $0x198] sm:$0xff] %v22
      %76 = vst [vmem:[#allocation2 + $0x1a0] sm:$0xff] %v22
      %77 = vst [vmem:[#allocation2 + $0x1a8] sm:$0xff] %v22
      %78 = vst [vmem:[#allocation2 + $0x1b0] sm:$0xff] %v22
      %79 = vst [vmem:[#allocation2 + $0x1b8] sm:$0xff] %v22
      %80 = vst [vmem:[#allocation2 + $0x1c0] sm:$0xff] %v22
      %81 = vst [vmem:[#allocation2 + $0x1c8] sm:$0xff] %v22
      %82 = vst [vmem:[#allocation2 + $0x1d0] sm:$0xff] %v22
      %83 = vst [vmem:[#allocation2 + $0x1d8] sm:$0xff] %v22
      %84 = vst [vmem:[#allocation2 + $0x1e0] sm:$0xff] %v22
      %85 = vst [vmem:[#allocation2 + $0x1e8] sm:$0xff] %v22
      %86 = vst [vmem:[#allocation2 + $0x1f0] sm:$0xff] %v22
      %87 = vst [vmem:[#allocation2 + $0x1f8] sm:$0xff] %v22
    $region17: #{tpu_custom_call.1} parent=1 // pred_fallthru
      _
    %v88 = vld [vmem:[#allocation2] sm:$0xff]
    %v89 = vld [vmem:[#allocation2 + $0x8] sm:$0xff]
    %v90 = vld [vmem:[#allocation2 + $0x10] sm:$0xff]
    %v91 = vld [vmem:[#allocation2 + $0x18] sm:$0xff]
    %v92 = vld [vmem:[#allocation2 + $0x20] sm:$0xff]
    %v93 = vld [vmem:[#allocation2 + $0x28] sm:$0xff]
    %v94 = vld [vmem:[#allocation2 + $0x30] sm:$0xff]
    %v95 = vld [vmem:[#allocation2 + $0x38] sm:$0xff]
    %v96 = vld [vmem:[#allocation2 + $0x40] sm:$0xff]
    %v97 = vld [vmem:[#allocation2 + $0x48] sm:$0xff]
    %v98 = vld [vmem:[#allocation2 + $0x50] sm:$0xff]
    %v99 = vld [vmem:[#allocation2 + $0x58] sm:$0xff]
    %v100 = vld [vmem:[#allocation2 + $0x60] sm:$0xff]
    %v101 = vld [vmem:[#allocation2 + $0x68] sm:$0xff]
    %v102 = vld [vmem:[#allocation2 + $0x70] sm:$0xff]
    %v103 = vld [vmem:[#allocation2 + $0x78] sm:$0xff]
    %v104 = vld [vmem:[#allocation2 + $0x80] sm:$0xff]
    %v105 = vld [vmem:[#allocation2 + $0x88] sm:$0xff]
    %v106 = vld [vmem:[#allocation2 + $0x90] sm:$0xff]
    %v107 = vld [vmem:[#allocation2 + $0x98] sm:$0xff]
    %v108 = vld [vmem:[#allocation2 + $0xa0] sm:$0xff]
    %v109 = vld [vmem:[#allocation2 + $0xa8] sm:$0xff]
    %v110 = vld [vmem:[#allocation2 + $0xb0] sm:$0xff]
    %v111 = vld [vmem:[#allocation2 + $0xb8] sm:$0xff]
    %v112 = vld [vmem:[#allocation2 + $0xc0] sm:$0xff]
    %v113 = vld [vmem:[#allocation2 + $0xc8] sm:$0xff]
    %v114 = vld [vmem:[#allocation2 + $0xd0] sm:$0xff]
    %v115 = vld [vmem:[#allocation2 + $0xd8] sm:$0xff]
    %v116 = vld [vmem:[#allocation2 + $0xe0] sm:$0xff]
    %v117 = vld [vmem:[#allocation2 + $0xe8] sm:$0xff]
    %v118 = vld [vmem:[#allocation2 + $0xf0] sm:$0xff]
    %v119 = vld [vmem:[#allocation2 + $0xf8] sm:$0xff]
    %v120 = vld [vmem:[#allocation2 + $0x100] sm:$0xff]
    %v121 = vld [vmem:[#allocation2 + $0x108] sm:$0xff]
    %v122 = vld [vmem:[#allocation2 + $0x110] sm:$0xff]
    %v123 = vld [vmem:[#allocation2 + $0x118] sm:$0xff]
    %v124 = vld [vmem:[#allocation2 + $0x120] sm:$0xff]
    %v125 = vld [vmem:[#allocation2 + $0x128] sm:$0xff]
    %v126 = vld [vmem:[#allocation2 + $0x130] sm:$0xff]
    %v127 = vld [vmem:[#allocation2 + $0x138] sm:$0xff]
    %v128 = vld [vmem:[#allocation2 + $0x140] sm:$0xff]
    %v129 = vld [vmem:[#allocation2 + $0x148] sm:$0xff]
    %v130 = vld [vmem:[#allocation2 + $0x150] sm:$0xff]
    %v131 = vld [vmem:[#allocation2 + $0x158] sm:$0xff]
    %v132 = vld [vmem:[#allocation2 + $0x160] sm:$0xff]
    %v133 = vld [vmem:[#allocation2 + $0x168] sm:$0xff]
    %v134 = vld [vmem:[#allocation2 + $0x170] sm:$0xff]
    %v135 = vld [vmem:[#allocation2 + $0x178] sm:$0xff]
    %v136 = vld [vmem:[#allocation2 + $0x180] sm:$0xff]
    %v137 = vld [vmem:[#allocation2 + $0x188] sm:$0xff]
    %v138 = vld [vmem:[#allocation2 + $0x190] sm:$0xff]
    %v139 = vld [vmem:[#allocation2 + $0x198] sm:$0xff]
    %v140 = vld [vmem:[#allocation2 + $0x1a0] sm:$0xff]
    %v141 = vld [vmem:[#allocation2 + $0x1a8] sm:$0xff]
    %v142 = vld [vmem:[#allocation2 + $0x1b0] sm:$0xff]
    %v143 = vld [vmem:[#allocation2 + $0x1b8] sm:$0xff]
    %v144 = vld [vmem:[#allocation2 + $0x1c0] sm:$0xff]
    %v145 = vld [vmem:[#allocation2 + $0x1c8] sm:$0xff]
    %v146 = vld [vmem:[#allocation2 + $0x1d0] sm:$0xff]
    %v147 = vld [vmem:[#allocation2 + $0x1d8] sm:$0xff]
    %v148 = vld [vmem:[#allocation2 + $0x1e0] sm:$0xff]
    %v149 = vld [vmem:[#allocation2 + $0x1e8] sm:$0xff]
    %v150 = vld [vmem:[#allocation2 + $0x1f0] sm:$0xff]
    %v151 = vld [vmem:[#allocation2 + $0x1f8] sm:$0xff]
    %v152 = vld [vmem:[%s0] sm:$0xf]
    %v153 = vld [vmem:[%s0 + $0x4] sm:$0xf]
    %v154 = vld [vmem:[%s0 + $0x8] sm:$0xf]
    %v155 = vld [vmem:[%s0 + $0xc] sm:$0xf]
    %v156 = vld [vmem:[%s0 + $0x10] sm:$0xf]
    %v157 = vld [vmem:[%s0 + $0x14] sm:$0xf]
    %v158 = vld [vmem:[%s0 + $0x18] sm:$0xf]
    %v159 = vld [vmem:[%s0 + $0x1c] sm:$0xf]
    %v160 = vld [vmem:[%s0 + $0x20] sm:$0xf]
    %v161 = vld [vmem:[%s0 + $0x24] sm:$0xf]
    %v162 = vld [vmem:[%s0 + $0x28] sm:$0xf]
    %v163 = vld [vmem:[%s0 + $0x2c] sm:$0xf]
    %v164 = vld [vmem:[%s0 + $0x30] sm:$0xf]
    %v165 = vld [vmem:[%s0 + $0x34] sm:$0xf]
    %v166 = vld [vmem:[%s0 + $0x38] sm:$0xf]
    %v167 = vld [vmem:[%s0 + $0x3c] sm:$0xf]
    %v168 = vld [vmem:[%s0 + $0x40] sm:$0xf]
    %v169 = vld [vmem:[%s0 + $0x44] sm:$0xf]
    %v170 = vld [vmem:[%s0 + $0x48] sm:$0xf]
    %v171 = vld [vmem:[%s0 + $0x4c] sm:$0xf]
    %v172 = vld [vmem:[%s0 + $0x50] sm:$0xf]
    %v173 = vld [vmem:[%s0 + $0x54] sm:$0xf]
    %v174 = vld [vmem:[%s0 + $0x58] sm:$0xf]
    %v175 = vld [vmem:[%s0 + $0x5c] sm:$0xf]
    %v176 = vld [vmem:[%s0 + $0x60] sm:$0xf]
    %v177 = vld [vmem:[%s0 + $0x64] sm:$0xf]
    %v178 = vld [vmem:[%s0 + $0x68] sm:$0xf]
    %v179 = vld [vmem:[%s0 + $0x6c] sm:$0xf]
    %v180 = vld [vmem:[%s0 + $0x70] sm:$0xf]
    %v181 = vld [vmem:[%s0 + $0x74] sm:$0xf]
    %v182 = vld [vmem:[%s0 + $0x78] sm:$0xf]
    %v183 = vld [vmem:[%s0 + $0x7c] sm:$0xf]
    %v184 = vld [vmem:[%s0 + $0x80] sm:$0xf]
    %v185 = vld [vmem:[%s0 + $0x84] sm:$0xf]
    %v186 = vld [vmem:[%s0 + $0x88] sm:$0xf]
    %v187 = vld [vmem:[%s0 + $0x8c] sm:$0xf]
    %v188 = vld [vmem:[%s0 + $0x90] sm:$0xf]
    %v189 = vld [vmem:[%s0 + $0x94] sm:$0xf]
    %v190 = vld [vmem:[%s0 + $0x98] sm:$0xf]
    %v191 = vld [vmem:[%s0 + $0x9c] sm:$0xf]
    %v192 = vld [vmem:[%s0 + $0xa0] sm:$0xf]
    %v193 = vld [vmem:[%s0 + $0xa4] sm:$0xf]
    %v194 = vld [vmem:[%s0 + $0xa8] sm:$0xf]
    %v195 = vld [vmem:[%s0 + $0xac] sm:$0xf]
    %v196 = vld [vmem:[%s0 + $0xb0] sm:$0xf]
    %v197 = vld [vmem:[%s0 + $0xb4] sm:$0xf]
    %v198 = vld [vmem:[%s0 + $0xb8] sm:$0xf]
    %v199 = vld [vmem:[%s0 + $0xbc] sm:$0xf]
    %v200 = vld [vmem:[%s0 + $0xc0] sm:$0xf]
    %v201 = vld [vmem:[%s0 + $0xc4] sm:$0xf]
    %v202 = vld [vmem:[%s0 + $0xc8] sm:$0xf]
    %v203 = vld [vmem:[%s0 + $0xcc] sm:$0xf]
    %v204 = vld [vmem:[%s0 + $0xd0] sm:$0xf]
    %v205 = vld [vmem:[%s0 + $0xd4] sm:$0xf]
    %v206 = vld [vmem:[%s0 + $0xd8] sm:$0xf]
    %v207 = vld [vmem:[%s0 + $0xdc] sm:$0xf]
    %v208 = vld [vmem:[%s0 + $0xe0] sm:$0xf]
    %v209 = vld [vmem:[%s0 + $0xe4] sm:$0xf]
    %v210 = vld [vmem:[%s0 + $0xe8] sm:$0xf]
    %v211 = vld [vmem:[%s0 + $0xec] sm:$0xf]
    %v212 = vld [vmem:[%s0 + $0xf0] sm:$0xf]
    %v213 = vld [vmem:[%s0 + $0xf4] sm:$0xf]
    %v214 = vld [vmem:[%s0 + $0xf8] sm:$0xf]
    %v215 = vld [vmem:[%s0 + $0xfc] sm:$0xf]
    %v216 = vld [vmem:[%s1] sm:$0xf]
    %v217 = vld [vmem:[%s1 + $0x4] sm:$0xf]
    %v218 = vld [vmem:[%s1 + $0x8] sm:$0xf]
    %v219 = vld [vmem:[%s1 + $0xc] sm:$0xf]
    %v220 = vld [vmem:[%s1 + $0x10] sm:$0x3]
    %v285 = vunpack.c.l.b16 %v152
    %v286 = vunpack.c.l.b16 %v153
    %v287 = vunpack.c.l.b16 %v154
    %v288 = vunpack.c.l.b16 %v155
    %v289 = vunpack.c.l.b16 %v156
    %v290 = vunpack.c.l.b16 %v157
    %v291 = vunpack.c.l.b16 %v158
    %v292 = vunpack.c.l.b16 %v159
    %v293 = vunpack.c.l.b16 %v160
    %v294 = vunpack.c.l.b16 %v161
    %v295 = vunpack.c.l.b16 %v162
    %v296 = vunpack.c.l.b16 %v163
    %v297 = vunpack.c.l.b16 %v164
    %v298 = vunpack.c.l.b16 %v165
    %v299 = vunpack.c.l.b16 %v166
    %v300 = vunpack.c.l.b16 %v167
    %v301 = vunpack.c.l.b16 %v168
    %v302 = vunpack.c.l.b16 %v169
    %v303 = vunpack.c.l.b16 %v170
    %v304 = vunpack.c.l.b16 %v171
    %v305 = vunpack.c.l.b16 %v172
    %v306 = vunpack.c.l.b16 %v173
    %v307 = vunpack.c.l.b16 %v174
    %v308 = vunpack.c.l.b16 %v175
    %v309 = vunpack.c.l.b16 %v176
    %v310 = vunpack.c.l.b16 %v177
    %v311 = vunpack.c.l.b16 %v178
    %v312 = vunpack.c.l.b16 %v179
    %v313 = vunpack.c.l.b16 %v180
    %v314 = vunpack.c.l.b16 %v181
    %v315 = vunpack.c.l.b16 %v182
    %v316 = vunpack.c.l.b16 %v183
    %v317 = vunpack.c.l.b16 %v184
    %v318 = vunpack.c.l.b16 %v185
    %v319 = vunpack.c.l.b16 %v186
    %v320 = vunpack.c.l.b16 %v187
    %v321 = vunpack.c.l.b16 %v188
    %v322 = vunpack.c.l.b16 %v189
    %v323 = vunpack.c.l.b16 %v190
    %v324 = vunpack.c.l.b16 %v191
    %v325 = vunpack.c.l.b16 %v192
    %v326 = vunpack.c.l.b16 %v193
    %v327 = vunpack.c.l.b16 %v194
    %v328 = vunpack.c.l.b16 %v195
    %v329 = vunpack.c.l.b16 %v196
    %v330 = vunpack.c.l.b16 %v197
    %v331 = vunpack.c.l.b16 %v198
    %v332 = vunpack.c.l.b16 %v199
    %v333 = vunpack.c.l.b16 %v200
    %v334 = vunpack.c.l.b16 %v201
    %v335 = vunpack.c.l.b16 %v202
    %v336 = vunpack.c.l.b16 %v203
    %v337 = vunpack.c.l.b16 %v204
    %v338 = vunpack.c.l.b16 %v205
    %v339 = vunpack.c.l.b16 %v206
    %v340 = vunpack.c.l.b16 %v207
    %v341 = vunpack.c.l.b16 %v208
    %v342 = vunpack.c.l.b16 %v209
    %v343 = vunpack.c.l.b16 %v210
    %v344 = vunpack.c.l.b16 %v211
    %v345 = vunpack.c.l.b16 %v212
    %v346 = vunpack.c.l.b16 %v213
    %v347 = vunpack.c.l.b16 %v214
    %v348 = vunpack.c.l.b16 %v215
    %v349 = vpack.c.b16 %v286, %v285
    %v350 = vpack.c.b16 %v288, %v287
    %v351 = vpack.c.b16 %v290, %v289
    %v352 = vpack.c.b16 %v292, %v291
    %v353 = vpack.c.b16 %v294, %v293
    %v354 = vpack.c.b16 %v296, %v295
    %v355 = vpack.c.b16 %v298, %v297
    %v356 = vpack.c.b16 %v300, %v299
    %v357 = vpack.c.b16 %v302, %v301
    %v358 = vpack.c.b16 %v304, %v303
    %v359 = vpack.c.b16 %v306, %v305
    %v360 = vpack.c.b16 %v308, %v307
    %v361 = vpack.c.b16 %v310, %v309
    %v362 = vpack.c.b16 %v312, %v311
    %v363 = vpack.c.b16 %v314, %v313
    %v364 = vpack.c.b16 %v316, %v315
    %v365 = vpack.c.b16 %v318, %v317
    %v366 = vpack.c.b16 %v320, %v319
    %v367 = vpack.c.b16 %v322, %v321
    %v368 = vpack.c.b16 %v324, %v323
    %v369 = vpack.c.b16 %v326, %v325
    %v370 = vpack.c.b16 %v328, %v327
    %v371 = vpack.c.b16 %v330, %v329
    %v372 = vpack.c.b16 %v332, %v331
    %v373 = vpack.c.b16 %v334, %v333
    %v374 = vpack.c.b16 %v336, %v335
    %v375 = vpack.c.b16 %v338, %v337
    %v376 = vpack.c.b16 %v340, %v339
    %v377 = vpack.c.b16 %v342, %v341
    %v378 = vpack.c.b16 %v344, %v343
    %v379 = vpack.c.b16 %v346, %v345
    %v380 = vpack.c.b16 %v348, %v347
    %v386 = vunpack.c.l.b16 %v216
    %v387 = vunpack.c.l.b16 %v217
    %v388 = vunpack.c.l.b16 %v218
    %v389 = vunpack.c.l.b16 %v219
    %v390 = vunpack.c.l.b16 %v220
    %v391 = vpack.c.b16 %v387, %v386
    %v392 = vpack.c.b16 %v389, %v388
    %v393 = vpack.c.b16 %v390, %v390
    %vm396 = vcmask 293888
    %v398 = vsel %vm396, %v349, 0
    %v401 = vsel %vm396, %v350, 0
    %v404 = vsel %vm396, %v351, 0
    %v407 = vsel %vm396, %v352, 0
    %v410 = vsel %vm396, %v353, 0
    %v413 = vsel %vm396, %v354, 0
    %v416 = vsel %vm396, %v355, 0
    %v419 = vsel %vm396, %v356, 0
    %v422 = vsel %vm396, %v357, 0
    %v425 = vsel %vm396, %v358, 0
    %v428 = vsel %vm396, %v359, 0
    %v431 = vsel %vm396, %v360, 0
    %v434 = vsel %vm396, %v361, 0
    %v437 = vsel %vm396, %v362, 0
    %v440 = vsel %vm396, %v363, 0
    %v443 = vsel %vm396, %v364, 0
    %v446 = vsel %vm396, %v365, 0
    %v449 = vsel %vm396, %v366, 0
    %v452 = vsel %vm396, %v367, 0
    %v455 = vsel %vm396, %v368, 0
    %v458 = vsel %vm396, %v369, 0
    %v461 = vsel %vm396, %v370, 0
    %v464 = vsel %vm396, %v371, 0
    %v467 = vsel %vm396, %v372, 0
    %v470 = vsel %vm396, %v373, 0
    %v473 = vsel %vm396, %v374, 0
    %v476 = vsel %vm396, %v375, 0
    %v479 = vsel %vm396, %v376, 0
    %v482 = vsel %vm396, %v377, 0
    %v485 = vsel %vm396, %v378, 0
    %v488 = vsel %vm396, %v379, 0
    %v491 = vsel %vm396, %v380, 0
    %vm493 = vcmask 1041408
    %v495 = vsel %vm493, %v393, 0
    %497 = vmatpush.bf16.msra.mxu0 0
    %498 = vmatpush.bf16.msra.mxu0 0
    %499 = vmatpush.bf16.msra.mxu0 0
    %500 = vmatpush.bf16.msra.mxu0 0
    %501 = vmatpush.bf16.msra.mxu0 0
    %502 = vmatpush.bf16.msra.mxu0 %v495
    %503 = vmatpush.bf16.msra.mxu0 %v392
    %504 = vmatpush.bf16.msra.mxu0 %v391
    %505 = vmatmul.bf16.gmra.mxu0 %v398
    %v506 = vpop.f32.mrf.mxu0
    %v507 = vadd.f32 0.0, %v506
    %v508 = vpop.f32.mrf.mxu0
    %v509 = vadd.f32 0.0, %v508
    %510 = vmatmul.bf16.gmra.mxu0 %v401
    %v511 = vpop.f32.mrf.mxu0
    %v512 = vadd.f32 0.0, %v511
    %v513 = vpop.f32.mrf.mxu0
    %v514 = vadd.f32 0.0, %v513
    %515 = vmatmul.bf16.gmra.mxu0 %v404
    %v516 = vpop.f32.mrf.mxu0
    %v517 = vadd.f32 0.0, %v516
    %v518 = vpop.f32.mrf.mxu0
    %v519 = vadd.f32 0.0, %v518
    %520 = vmatmul.bf16.gmra.mxu0 %v407
    %v521 = vpop.f32.mrf.mxu0
    %v522 = vadd.f32 0.0, %v521
    %v523 = vpop.f32.mrf.mxu0
    %v524 = vadd.f32 0.0, %v523
    %525 = vmatmul.bf16.gmra.mxu0 %v410
    %v526 = vpop.f32.mrf.mxu0
    %v527 = vadd.f32 0.0, %v526
    %v528 = vpop.f32.mrf.mxu0
    %v529 = vadd.f32 0.0, %v528
    %530 = vmatmul.bf16.gmra.mxu0 %v413
    %v531 = vpop.f32.mrf.mxu0
    %v532 = vadd.f32 0.0, %v531
    %v533 = vpop.f32.mrf.mxu0
    %v534 = vadd.f32 0.0, %v533
    %535 = vmatmul.bf16.gmra.mxu0 %v416
    %v536 = vpop.f32.mrf.mxu0
    %v537 = vadd.f32 0.0, %v536
    %v538 = vpop.f32.mrf.mxu0
    %v539 = vadd.f32 0.0, %v538
    %540 = vmatmul.bf16.gmra.mxu0 %v419
    %v541 = vpop.f32.mrf.mxu0
    %v542 = vadd.f32 0.0, %v541
    %v543 = vpop.f32.mrf.mxu0
    %v544 = vadd.f32 0.0, %v543
    %545 = vmatmul.bf16.gmra.mxu0 %v422
    %v546 = vpop.f32.mrf.mxu0
    %v547 = vadd.f32 0.0, %v546
    %v548 = vpop.f32.mrf.mxu0
    %v549 = vadd.f32 0.0, %v548
    %550 = vmatmul.bf16.gmra.mxu0 %v425
    %v551 = vpop.f32.mrf.mxu0
    %v552 = vadd.f32 0.0, %v551
    %v553 = vpop.f32.mrf.mxu0
    %v554 = vadd.f32 0.0, %v553
    %555 = vmatmul.bf16.gmra.mxu0 %v428
    %v556 = vpop.f32.mrf.mxu0
    %v557 = vadd.f32 0.0, %v556
    %v558 = vpop.f32.mrf.mxu0
    %v559 = vadd.f32 0.0, %v558
    %560 = vmatmul.bf16.gmra.mxu0 %v431
    %v561 = vpop.f32.mrf.mxu0
    %v562 = vadd.f32 0.0, %v561
    %v563 = vpop.f32.mrf.mxu0
    %v564 = vadd.f32 0.0, %v563
    %565 = vmatmul.bf16.gmra.mxu0 %v434
    %v566 = vpop.f32.mrf.mxu0
    %v567 = vadd.f32 0.0, %v566
    %v568 = vpop.f32.mrf.mxu0
    %v569 = vadd.f32 0.0, %v568
    %570 = vmatmul.bf16.gmra.mxu0 %v437
    %v571 = vpop.f32.mrf.mxu0
    %v572 = vadd.f32 0.0, %v571
    %v573 = vpop.f32.mrf.mxu0
    %v574 = vadd.f32 0.0, %v573
    %575 = vmatmul.bf16.gmra.mxu0 %v440
    %v576 = vpop.f32.mrf.mxu0
    %v577 = vadd.f32 0.0, %v576
    %v578 = vpop.f32.mrf.mxu0
    %v579 = vadd.f32 0.0, %v578
    %580 = vmatmul.bf16.gmra.mxu0 %v443
    %v581 = vpop.f32.mrf.mxu0
    %v582 = vadd.f32 0.0, %v581
    %v583 = vpop.f32.mrf.mxu0
    %v584 = vadd.f32 0.0, %v583
    %585 = vmatmul.bf16.gmra.mxu0 %v446
    %v586 = vpop.f32.mrf.mxu0
    %v587 = vadd.f32 0.0, %v586
    %v588 = vpop.f32.mrf.mxu0
    %v589 = vadd.f32 0.0, %v588
    %590 = vmatmul.bf16.gmra.mxu0 %v449
    %v591 = vpop.f32.mrf.mxu0
    %v592 = vadd.f32 0.0, %v591
    %v593 = vpop.f32.mrf.mxu0
    %v594 = vadd.f32 0.0, %v593
    %595 = vmatmul.bf16.gmra.mxu0 %v452
    %v596 = vpop.f32.mrf.mxu0
    %v597 = vadd.f32 0.0, %v596
    %v598 = vpop.f32.mrf.mxu0
    %v599 = vadd.f32 0.0, %v598
    %600 = vmatmul.bf16.gmra.mxu0 %v455
    %v601 = vpop.f32.mrf.mxu0
    %v602 = vadd.f32 0.0, %v601
    %v603 = vpop.f32.mrf.mxu0
    %v604 = vadd.f32 0.0, %v603
    %605 = vmatmul.bf16.gmra.mxu0 %v458
    %v606 = vpop.f32.mrf.mxu0
    %v607 = vadd.f32 0.0, %v606
    %v608 = vpop.f32.mrf.mxu0
    %v609 = vadd.f32 0.0, %v608
    %610 = vmatmul.bf16.gmra.mxu0 %v461
    %v611 = vpop.f32.mrf.mxu0
    %v612 = vadd.f32 0.0, %v611
    %v613 = vpop.f32.mrf.mxu0
    %v614 = vadd.f32 0.0, %v613
    %615 = vmatmul.bf16.gmra.mxu0 %v464
    %v616 = vpop.f32.mrf.mxu0
    %v617 = vadd.f32 0.0, %v616
    %v618 = vpop.f32.mrf.mxu0
    %v619 = vadd.f32 0.0, %v618
    %620 = vmatmul.bf16.gmra.mxu0 %v467
    %v621 = vpop.f32.mrf.mxu0
    %v622 = vadd.f32 0.0, %v621
    %v623 = vpop.f32.mrf.mxu0
    %v624 = vadd.f32 0.0, %v623
    %625 = vmatmul.bf16.gmra.mxu0 %v470
    %v626 = vpop.f32.mrf.mxu0
    %v627 = vadd.f32 0.0, %v626
    %v628 = vpop.f32.mrf.mxu0
    %v629 = vadd.f32 0.0, %v628
    %630 = vmatmul.bf16.gmra.mxu0 %v473
    %v631 = vpop.f32.mrf.mxu0
    %v632 = vadd.f32 0.0, %v631
    %v633 = vpop.f32.mrf.mxu0
    %v634 = vadd.f32 0.0, %v633
    %635 = vmatmul.bf16.gmra.mxu0 %v476
    %v636 = vpop.f32.mrf.mxu0
    %v637 = vadd.f32 0.0, %v636
    %v638 = vpop.f32.mrf.mxu0
    %v639 = vadd.f32 0.0, %v638
    %640 = vmatmul.bf16.gmra.mxu0 %v479
    %v641 = vpop.f32.mrf.mxu0
    %v642 = vadd.f32 0.0, %v641
    %v643 = vpop.f32.mrf.mxu0
    %v644 = vadd.f32 0.0, %v643
    %645 = vmatmul.bf16.gmra.mxu0 %v482
    %v646 = vpop.f32.mrf.mxu0
    %v647 = vadd.f32 0.0, %v646
    %v648 = vpop.f32.mrf.mxu0
    %v649 = vadd.f32 0.0, %v648
    %650 = vmatmul.bf16.gmra.mxu0 %v485
    %v651 = vpop.f32.mrf.mxu0
    %v652 = vadd.f32 0.0, %v651
    %v653 = vpop.f32.mrf.mxu0
    %v654 = vadd.f32 0.0, %v653
    %655 = vmatmul.bf16.gmra.mxu0 %v488
    %v656 = vpop.f32.mrf.mxu0
    %v657 = vadd.f32 0.0, %v656
    %v658 = vpop.f32.mrf.mxu0
    %v659 = vadd.f32 0.0, %v658
    %660 = vmatmul.bf16.gmra.mxu0 %v491
    %v661 = vpop.f32.mrf.mxu0
    %v662 = vadd.f32 0.0, %v661
    %v663 = vpop.f32.mrf.mxu0
    %v664 = vadd.f32 0.0, %v663
    %665 = vdwg.mxu0
    %v666 = vadd.f32 %v88, %v507
    %v667 = vadd.f32 %v89, %v509
    %v668 = vadd.f32 %v90, %v512
    %v669 = vadd.f32 %v91, %v514
    %v670 = vadd.f32 %v92, %v517
    %v671 = vadd.f32 %v93, %v519
    %v672 = vadd.f32 %v94, %v522
    %v673 = vadd.f32 %v95, %v524
    %v674 = vadd.f32 %v96, %v527
    %v675 = vadd.f32 %v97, %v529
    %v676 = vadd.f32 %v98, %v532
    %v677 = vadd.f32 %v99, %v534
    %v678 = vadd.f32 %v100, %v537
    %v679 = vadd.f32 %v101, %v539
    %v680 = vadd.f32 %v102, %v542
    %v681 = vadd.f32 %v103, %v544
    %v682 = vadd.f32 %v104, %v547
    %v683 = vadd.f32 %v105, %v549
    %v684 = vadd.f32 %v106, %v552
    %v685 = vadd.f32 %v107, %v554
    %v686 = vadd.f32 %v108, %v557
    %v687 = vadd.f32 %v109, %v559
    %v688 = vadd.f32 %v110, %v562
    %v689 = vadd.f32 %v111, %v564
    %v690 = vadd.f32 %v112, %v567
    %v691 = vadd.f32 %v113, %v569
    %v692 = vadd.f32 %v114, %v572
    %v693 = vadd.f32 %v115, %v574
    %v694 = vadd.f32 %v116, %v577
    %v695 = vadd.f32 %v117, %v579
    %v696 = vadd.f32 %v118, %v582
    %v697 = vadd.f32 %v119, %v584
    %v698 = vadd.f32 %v120, %v587
    %v699 = vadd.f32 %v121, %v589
    %v700 = vadd.f32 %v122, %v592
    %v701 = vadd.f32 %v123, %v594
    %v702 = vadd.f32 %v124, %v597
    %v703 = vadd.f32 %v125, %v599
    %v704 = vadd.f32 %v126, %v602
    %v705 = vadd.f32 %v127, %v604
    %v706 = vadd.f32 %v128, %v607
    %v707 = vadd.f32 %v129, %v609
    %v708 = vadd.f32 %v130, %v612
    %v709 = vadd.f32 %v131, %v614
    %v710 = vadd.f32 %v132, %v617
    %v711 = vadd.f32 %v133, %v619
    %v712 = vadd.f32 %v134, %v622
    %v713 = vadd.f32 %v135, %v624
    %v714 = vadd.f32 %v136, %v627
    %v715 = vadd.f32 %v137, %v629
    %v716 = vadd.f32 %v138, %v632
    %v717 = vadd.f32 %v139, %v634
    %v718 = vadd.f32 %v140, %v637
    %v719 = vadd.f32 %v141, %v639
    %v720 = vadd.f32 %v142, %v642
    %v721 = vadd.f32 %v143, %v644
    %v722 = vadd.f32 %v144, %v647
    %v723 = vadd.f32 %v145, %v649
    %v724 = vadd.f32 %v146, %v652
    %v725 = vadd.f32 %v147, %v654
    %v726 = vadd.f32 %v148, %v657
    %v727 = vadd.f32 %v149, %v659
    %v728 = vadd.f32 %v150, %v662
    %v729 = vadd.f32 %v151, %v664
    %730 = vst [vmem:[#allocation2] sm:$0xff] %v666
    %731 = vst [vmem:[#allocation2 + $0x8] sm:$0xff] %v667
    %732 = vst [vmem:[#allocation2 + $0x10] sm:$0xff] %v668
    %733 = vst [vmem:[#allocation2 + $0x18] sm:$0xff] %v669
    %734 = vst [vmem:[#allocation2 + $0x20] sm:$0xff] %v670
    %735 = vst [vmem:[#allocation2 + $0x28] sm:$0xff] %v671
    %736 = vst [vmem:[#allocation2 + $0x30] sm:$0xff] %v672
    %737 = vst [vmem:[#allocation2 + $0x38] sm:$0xff] %v673
    %738 = vst [vmem:[#allocation2 + $0x40] sm:$0xff] %v674
    %739 = vst [vmem:[#allocation2 + $0x48] sm:$0xff] %v675
    %740 = vst [vmem:[#allocation2 + $0x50] sm:$0xff] %v676
    %741 = vst [vmem:[#allocation2 + $0x58] sm:$0xff] %v677
    %742 = vst [vmem:[#allocation2 + $0x60] sm:$0xff] %v678
    %743 = vst [vmem:[#allocation2 + $0x68] sm:$0xff] %v679
    %744 = vst [vmem:[#allocation2 + $0x70] sm:$0xff] %v680
    %745 = vst [vmem:[#allocation2 + $0x78] sm:$0xff] %v681
    %746 = vst [vmem:[#allocation2 + $0x80] sm:$0xff] %v682
    %747 = vst [vmem:[#allocation2 + $0x88] sm:$0xff] %v683
    %748 = vst [vmem:[#allocation2 + $0x90] sm:$0xff] %v684
    %749 = vst [vmem:[#allocation2 + $0x98] sm:$0xff] %v685
    %750 = vst [vmem:[#allocation2 + $0xa0] sm:$0xff] %v686
    %751 = vst [vmem:[#allocation2 + $0xa8] sm:$0xff] %v687
    %752 = vst [vmem:[#allocation2 + $0xb0] sm:$0xff] %v688
    %753 = vst [vmem:[#allocation2 + $0xb8] sm:$0xff] %v689
    %754 = vst [vmem:[#allocation2 + $0xc0] sm:$0xff] %v690
    %755 = vst [vmem:[#allocation2 + $0xc8] sm:$0xff] %v691
    %756 = vst [vmem:[#allocation2 + $0xd0] sm:$0xff] %v692
    %757 = vst [vmem:[#allocation2 + $0xd8] sm:$0xff] %v693
    %758 = vst [vmem:[#allocation2 + $0xe0] sm:$0xff] %v694
    %759 = vst [vmem:[#allocation2 + $0xe8] sm:$0xff] %v695
    %760 = vst [vmem:[#allocation2 + $0xf0] sm:$0xff] %v696
    %761 = vst [vmem:[#allocation2 + $0xf8] sm:$0xff] %v697
    %762 = vst [vmem:[#allocation2 + $0x100] sm:$0xff] %v698
    %763 = vst [vmem:[#allocation2 + $0x108] sm:$0xff] %v699
    %764 = vst [vmem:[#allocation2 + $0x110] sm:$0xff] %v700
    %765 = vst [vmem:[#allocation2 + $0x118] sm:$0xff] %v701
    %766 = vst [vmem:[#allocation2 + $0x120] sm:$0xff] %v702
    %767 = vst [vmem:[#allocation2 + $0x128] sm:$0xff] %v703
    %768 = vst [vmem:[#allocation2 + $0x130] sm:$0xff] %v704
    %769 = vst [vmem:[#allocation2 + $0x138] sm:$0xff] %v705
    %770 = vst [vmem:[#allocation2 + $0x140] sm:$0xff] %v706
    %771 = vst [vmem:[#allocation2 + $0x148] sm:$0xff] %v707
    %772 = vst [vmem:[#allocation2 + $0x150] sm:$0xff] %v708
    %773 = vst [vmem:[#allocation2 + $0x158] sm:$0xff] %v709
    %774 = vst [vmem:[#allocation2 + $0x160] sm:$0xff] %v710
    %775 = vst [vmem:[#allocation2 + $0x168] sm:$0xff] %v711
    %776 = vst [vmem:[#allocation2 + $0x170] sm:$0xff] %v712
    %777 = vst [vmem:[#allocation2 + $0x178] sm:$0xff] %v713
    %778 = vst [vmem:[#allocation2 + $0x180] sm:$0xff] %v714
    %779 = vst [vmem:[#allocation2 + $0x188] sm:$0xff] %v715
    %780 = vst [vmem:[#allocation2 + $0x190] sm:$0xff] %v716
    %781 = vst [vmem:[#allocation2 + $0x198] sm:$0xff] %v717
    %782 = vst [vmem:[#allocation2 + $0x1a0] sm:$0xff] %v718
    %783 = vst [vmem:[#allocation2 + $0x1a8] sm:$0xff] %v719
    %784 = vst [vmem:[#allocation2 + $0x1b0] sm:$0xff] %v720
    %785 = vst [vmem:[#allocation2 + $0x1b8] sm:$0xff] %v721
    %786 = vst [vmem:[#allocation2 + $0x1c0] sm:$0xff] %v722
    %787 = vst [vmem:[#allocation2 + $0x1c8] sm:$0xff] %v723
    %788 = vst [vmem:[#allocation2 + $0x1d0] sm:$0xff] %v724
    %789 = vst [vmem:[#allocation2 + $0x1d8] sm:$0xff] %v725
    %790 = vst [vmem:[#allocation2 + $0x1e0] sm:$0xff] %v726
    %791 = vst [vmem:[#allocation2 + $0x1e8] sm:$0xff] %v727
    %792 = vst [vmem:[#allocation2 + $0x1f0] sm:$0xff] %v728
    %793 = vst [vmem:[#allocation2 + $0x1f8] sm:$0xff] %v729
    // Predicated region
    $region18: #{tpu_custom_call.1} parent=1 // pred_check
      %p794 = pneg %p16
    $region19: #{tpu_custom_call.1} parent=1 // pred_check_branch
      %796 = sbr.rel (%p794) target = $region21
    $region20: #{tpu_custom_call.1} parent=1 // pred_region
      %v797 = vld [vmem:[#allocation2] sm:$0xff]
      %v798 = vld [vmem:[#allocation2 + $0x8] sm:$0xff]
      %v799 = vld [vmem:[#allocation2 + $0x10] sm:$0xff]
      %v800 = vld [vmem:[#allocation2 + $0x18] sm:$0xff]
      %v801 = vld [vmem:[#allocation2 + $0x20] sm:$0xff]
      %v802 = vld [vmem:[#allocation2 + $0x28] sm:$0xff]
      %v803 = vld [vmem:[#allocation2 + $0x30] sm:$0xff]
      %v804 = vld [vmem:[#allocation2 + $0x38] sm:$0xff]
      %v805 = vld [vmem:[#allocation2 + $0x40] sm:$0xff]
      %v806 = vld [vmem:[#allocation2 + $0x48] sm:$0xff]
      %v807 = vld [vmem:[#allocation2 + $0x50] sm:$0xff]
      %v808 = vld [vmem:[#allocation2 + $0x58] sm:$0xff]
      %v809 = vld [vmem:[#allocation2 + $0x60] sm:$0xff]
      %v810 = vld [vmem:[#allocation2 + $0x68] sm:$0xff]
      %v811 = vld [vmem:[#allocation2 + $0x70] sm:$0xff]
      %v812 = vld [vmem:[#allocation2 + $0x78] sm:$0xff]
      %v813 = vld [vmem:[#allocation2 + $0x80] sm:$0xff]
      %v814 = vld [vmem:[#allocation2 + $0x88] sm:$0xff]
      %v815 = vld [vmem:[#allocation2 + $0x90] sm:$0xff]
      %v816 = vld [vmem:[#allocation2 + $0x98] sm:$0xff]
      %v817 = vld [vmem:[#allocation2 + $0xa0] sm:$0xff]
      %v818 = vld [vmem:[#allocation2 + $0xa8] sm:$0xff]
      %v819 = vld [vmem:[#allocation2 + $0xb0] sm:$0xff]
      %v820 = vld [vmem:[#allocation2 + $0xb8] sm:$0xff]
      %v821 = vld [vmem:[#allocation2 + $0xc0] sm:$0xff]
      %v822 = vld [vmem:[#allocation2 + $0xc8] sm:$0xff]
      %v823 = vld [vmem:[#allocation2 + $0xd0] sm:$0xff]
      %v824 = vld [vmem:[#allocation2 + $0xd8] sm:$0xff]
      %v825 = vld [vmem:[#allocation2 + $0xe0] sm:$0xff]
      %v826 = vld [vmem:[#allocation2 + $0xe8] sm:$0xff]
      %v827 = vld [vmem:[#allocation2 + $0xf0] sm:$0xff]
      %v828 = vld [vmem:[#allocation2 + $0xf8] sm:$0xff]
      %v829 = vld [vmem:[#allocation2 + $0x100] sm:$0xff]
      %v830 = vld [vmem:[#allocation2 + $0x108] sm:$0xff]
      %v831 = vld [vmem:[#allocation2 + $0x110] sm:$0xff]
      %v832 = vld [vmem:[#allocation2 + $0x118] sm:$0xff]
      %v833 = vld [vmem:[#allocation2 + $0x120] sm:$0xff]
      %v834 = vld [vmem:[#allocation2 + $0x128] sm:$0xff]
      %v835 = vld [vmem:[#allocation2 + $0x130] sm:$0xff]
      %v836 = vld [vmem:[#allocation2 + $0x138] sm:$0xff]
      %v837 = vld [vmem:[#allocation2 + $0x140] sm:$0xff]
      %v838 = vld [vmem:[#allocation2 + $0x148] sm:$0xff]
      %v839 = vld [vmem:[#allocation2 + $0x150] sm:$0xff]
      %v840 = vld [vmem:[#allocation2 + $0x158] sm:$0xff]
      %v841 = vld [vmem:[#allocation2 + $0x160] sm:$0xff]
      %v842 = vld [vmem:[#allocation2 + $0x168] sm:$0xff]
      %v843 = vld [vmem:[#allocation2 + $0x170] sm:$0xff]
      %v844 = vld [vmem:[#allocation2 + $0x178] sm:$0xff]
      %v845 = vld [vmem:[#allocation2 + $0x180] sm:$0xff]
      %v846 = vld [vmem:[#allocation2 + $0x188] sm:$0xff]
      %v847 = vld [vmem:[#allocation2 + $0x190] sm:$0xff]
      %v848 = vld [vmem:[#allocation2 + $0x198] sm:$0xff]
      %v849 = vld [vmem:[#allocation2 + $0x1a0] sm:$0xff]
      %v850 = vld [vmem:[#allocation2 + $0x1a8] sm:$0xff]
      %v851 = vld [vmem:[#allocation2 + $0x1b0] sm:$0xff]
      %v852 = vld [vmem:[#allocation2 + $0x1b8] sm:$0xff]
      %v853 = vld [vmem:[#allocation2 + $0x1c0] sm:$0xff]
      %v854 = vld [vmem:[#allocation2 + $0x1c8] sm:$0xff]
      %v855 = vld [vmem:[#allocation2 + $0x1d0] sm:$0xff]
      %v856 = vld [vmem:[#allocation2 + $0x1d8] sm:$0xff]
      %v857 = vld [vmem:[#allocation2 + $0x1e0] sm:$0xff]
      %v858 = vld [vmem:[#allocation2 + $0x1e8] sm:$0xff]
      %v859 = vld [vmem:[#allocation2 + $0x1f0] sm:$0xff]
      %v860 = vld [vmem:[#allocation2 + $0x1f8] sm:$0xff]
      %861 = vst [vmem:[#allocation3] sm:$0xff] %v797
      %862 = vst [vmem:[#allocation3 + $0x8] sm:$0xff] %v798
      %863 = vst [vmem:[#allocation3 + $0x10] sm:$0xff] %v799
      %864 = vst [vmem:[#allocation3 + $0x18] sm:$0xff] %v800
      %865 = vst [vmem:[#allocation3 + $0x20] sm:$0xff] %v801
      %866 = vst [vmem:[#allocation3 + $0x28] sm:$0xff] %v802
      %867 = vst [vmem:[#allocation3 + $0x30] sm:$0xff] %v803
      %868 = vst [vmem:[#allocation3 + $0x38] sm:$0xff] %v804
      %869 = vst [vmem:[#allocation3 + $0x40] sm:$0xff] %v805
      %870 = vst [vmem:[#allocation3 + $0x48] sm:$0xff] %v806
      %871 = vst [vmem:[#allocation3 + $0x50] sm:$0xff] %v807
      %872 = vst [vmem:[#allocation3 + $0x58] sm:$0xff] %v808
      %873 = vst [vmem:[#allocation3 + $0x60] sm:$0xff] %v809
      %874 = vst [vmem:[#allocation3 + $0x68] sm:$0xff] %v810
      %875 = vst [vmem:[#allocation3 + $0x70] sm:$0xff] %v811
      %876 = vst [vmem:[#allocation3 + $0x78] sm:$0xff] %v812
      %877 = vst [vmem:[#allocation3 + $0x80] sm:$0xff] %v813
      %878 = vst [vmem:[#allocation3 + $0x88] sm:$0xff] %v814
      %879 = vst [vmem:[#allocation3 + $0x90] sm:$0xff] %v815
      %880 = vst [vmem:[#allocation3 + $0x98] sm:$0xff] %v816
      %881 = vst [vmem:[#allocation3 + $0xa0] sm:$0xff] %v817
      %882 = vst [vmem:[#allocation3 + $0xa8] sm:$0xff] %v818
      %883 = vst [vmem:[#allocation3 + $0xb0] sm:$0xff] %v819
      %884 = vst [vmem:[#allocation3 + $0xb8] sm:$0xff] %v820
      %885 = vst [vmem:[#allocation3 + $0xc0] sm:$0xff] %v821
      %886 = vst [vmem:[#allocation3 + $0xc8] sm:$0xff] %v822
      %887 = vst [vmem:[#allocation3 + $0xd0] sm:$0xff] %v823
      %888 = vst [vmem:[#allocation3 + $0xd8] sm:$0xff] %v824
      %889 = vst [vmem:[#allocation3 + $0xe0] sm:$0xff] %v825
      %890 = vst [vmem:[#allocation3 + $0xe8] sm:$0xff] %v826
      %891 = vst [vmem:[#allocation3 + $0xf0] sm:$0xff] %v827
      %892 = vst [vmem:[#allocation3 + $0xf8] sm:$0xff] %v828
      %893 = vst [vmem:[#allocation3 + $0x100] sm:$0xff] %v829
      %894 = vst [vmem:[#allocation3 + $0x108] sm:$0xff] %v830
      %895 = vst [vmem:[#allocation3 + $0x110] sm:$0xff] %v831
      %896 = vst [vmem:[#allocation3 + $0x118] sm:$0xff] %v832
      %897 = vst [vmem:[#allocation3 + $0x120] sm:$0xff] %v833
      %898 = vst [vmem:[#allocation3 + $0x128] sm:$0xff] %v834
      %899 = vst [vmem:[#allocation3 + $0x130] sm:$0xff] %v835
      %900 = vst [vmem:[#allocation3 + $0x138] sm:$0xff] %v836
      %901 = vst [vmem:[#allocation3 + $0x140] sm:$0xff] %v837
      %902 = vst [vmem:[#allocation3 + $0x148] sm:$0xff] %v838
      %903 = vst [vmem:[#allocation3 + $0x150] sm:$0xff] %v839
      %904 = vst [vmem:[#allocation3 + $0x158] sm:$0xff] %v840
      %905 = vst [vmem:[#allocation3 + $0x160] sm:$0xff] %v841
      %906 = vst [vmem:[#allocation3 + $0x168] sm:$0xff] %v842
      %907 = vst [vmem:[#allocation3 + $0x170] sm:$0xff] %v843
      %908 = vst [vmem:[#allocation3 + $0x178] sm:$0xff] %v844
      %909 = vst [vmem:[#allocation3 + $0x180] sm:$0xff] %v845
      %910 = vst [vmem:[#allocation3 + $0x188] sm:$0xff] %v846
      %911 = vst [vmem:[#allocation3 + $0x190] sm:$0xff] %v847
      %912 = vst [vmem:[#allocation3 + $0x198] sm:$0xff] %v848
      %913 = vst [vmem:[#allocation3 + $0x1a0] sm:$0xff] %v849
      %914 = vst [vmem:[#allocation3 + $0x1a8] sm:$0xff] %v850
      %915 = vst [vmem:[#allocation3 + $0x1b0] sm:$0xff] %v851
      %916 = vst [vmem:[#allocation3 + $0x1b8] sm:$0xff] %v852
      %917 = vst [vmem:[#allocation3 + $0x1c0] sm:$0xff] %v853
      %918 = vst [vmem:[#allocation3 + $0x1c8] sm:$0xff] %v854
      %919 = vst [vmem:[#allocation3 + $0x1d0] sm:$0xff] %v855
      %920 = vst [vmem:[#allocation3 + $0x1d8] sm:$0xff] %v856
      %921 = vst [vmem:[#allocation3 + $0x1e0] sm:$0xff] %v857
      %922 = vst [vmem:[#allocation3 + $0x1e8] sm:$0xff] %v858
      %923 = vst [vmem:[#allocation3 + $0x1f0] sm:$0xff] %v859
      %924 = vst [vmem:[#allocation3 + $0x1f8] sm:$0xff] %v860
    $region21: #{tpu_custom_call.1} parent=1 // pred_fallthru
      _
    // Predicated region
    $region22: #{tpu_custom_call.1} parent=1 // pred_check
      _
    $region23: #{tpu_custom_call.1} parent=1 // pred_check_branch
      %926 = sbr.rel (0) target = $region25
    $region24: #{tpu_custom_call.1} parent=1 // pred_region
      %928 = vsyncadd [#allocation4], 0
      %s929 = sshll.u32 [#allocation3], 4
      %s930 = int_to_ptr.vmem [resolvable:$true] %s929
      %s931 = sshll.u32 %s3, 4
      %s932 = int_to_ptr.hbm [resolvable:$true] %s931
      %937 = dma.vmem_to_hbm [thread:$0]  %s930, 8192, %s932, [#allocation4], 128, 128, 8
    $region25: #{tpu_custom_call.1} parent=1 // pred_fallthru
      _
    // Predicated region
    $region26: #{tpu_custom_call.1} parent=1 // pred_check
      _
    $region27: #{tpu_custom_call.1} parent=1 // pred_check_branch
      %939 = sbr.rel (0) target = $region29
    $region28: #{tpu_custom_call.1} parent=1 // pred_region
      %941 = dma.done [#allocation4], 8192
    $region29: #{tpu_custom_call.1} parent=1 // pred_fallthru
      _
    %942 = vsyncpa [#allocation4], 1

</llo_original>
